<compile_context>
chip_gen: v6e
topology: v6e:2x2x1
jax: 0.10.0
libtpu: 0.0.40
codegen_flags: <defaults>
</compile_context>

<pallas_src>
import functools

import jax
import jax.numpy as jnp
from jax.experimental import pallas as pl
from jax.experimental.pallas import tpu as pltpu


# Module hyper-parameters (from WassersteinDROLoss.__init__ defaults)
EPSILON = 0.5
BASE_MARGIN = 1.0
ADAPT_RATE = 0.3


def _wdro_kernel(out_ref, tgt_ref, feat_ref, loss_ref, acc_ref, *, n_total):
    """One batch tile of: CE + adaptive_margin * Wasserstein penalty."""
    i = pl.program_id(0)

    @pl.when(i == 0)
    def _():
        acc_ref[0, 0] = 0.0

    logits = out_ref[...].astype(jnp.float32)      # (TN, C)
    tgt = tgt_ref[...]                             # (TN, 1) int32
    feats = feat_ref[...].astype(jnp.float32)      # (TN, D)

    tn, c = logits.shape

    # --- per-sample cross entropy: logsumexp(logits) - logits[target] ---
    col = jax.lax.broadcasted_iota(jnp.int32, (tn, c), 1)
    onehot = col == tgt                                              # (TN, C)
    logit_t = jnp.sum(jnp.where(onehot, logits, 0.0), axis=1, keepdims=True)
    m = jnp.max(logits, axis=1, keepdims=True)
    sumexp = jnp.sum(jnp.exp(logits - m), axis=1, keepdims=True)
    lse = m + jnp.log(sumexp)                                        # (TN, 1)
    ce = lse - logit_t                                               # (TN, 1)

    # --- Wasserstein penalty from feature L2 norms ---
    fnorm = jnp.sqrt(jnp.sum(feats * feats, axis=1, keepdims=True))  # (TN, 1)
    penalty = jnp.maximum(fnorm - EPSILON, 0.0)                      # (TN, 1)

    # --- adaptive margin from softmax confidence ---
    # confidence = exp(max_logit - lse) == 1 / sumexp (exact identity)
    confidence = pl.reciprocal(sumexp, approx=False)
    margin = BASE_MARGIN * (1.0 + ADAPT_RATE * (1.0 - confidence))

    loss = ce + margin * penalty                                     # (TN, 1)

    # Mask rows past the true batch size (last partial tile reads garbage).
    row = jax.lax.broadcasted_iota(jnp.int32, (tn, 1), 0) + i * tn
    loss = jnp.where(row < n_total, loss, 0.0)

    acc_ref[0, 0] += jnp.sum(loss)

    @pl.when(i == pl.num_programs(0) - 1)
    def _():
        loss_ref[0, 0] = acc_ref[0, 0] * (1.0 / n_total)


def _ce_only_kernel(out_ref, tgt_ref, loss_ref, acc_ref, *, n_total):
    """features=None branch: plain mean cross entropy, tiled over batch."""
    i = pl.program_id(0)

    @pl.when(i == 0)
    def _():
        acc_ref[0, 0] = 0.0

    logits = out_ref[...].astype(jnp.float32)
    tgt = tgt_ref[...]
    tn, c = logits.shape

    col = jax.lax.broadcasted_iota(jnp.int32, (tn, c), 1)
    onehot = col == tgt
    logit_t = jnp.sum(jnp.where(onehot, logits, 0.0), axis=1, keepdims=True)
    m = jnp.max(logits, axis=1, keepdims=True)
    lse = m + jnp.log(jnp.sum(jnp.exp(logits - m), axis=1, keepdims=True))
    ce = lse - logit_t

    row = jax.lax.broadcasted_iota(jnp.int32, (tn, 1), 0) + i * tn
    ce = jnp.where(row < n_total, ce, 0.0)

    acc_ref[0, 0] += jnp.sum(ce)

    @pl.when(i == pl.num_programs(0) - 1)
    def _():
        loss_ref[0, 0] = acc_ref[0, 0] * (1.0 / n_total)


def _pick_tile(n, row_bytes):
    """Pick a batch tile: big enough to pipeline well, small enough that the
    double-buffered inputs fit comfortably even on v5e's 16 MiB scoped VMEM
    default and v7x's 64 MiB physical VMEM."""
    budget = 8 * 1024 * 1024                       # window budget for inputs
    max_rows = max(8, budget // max(2 * row_bytes, 1))
    tn = min(512, max_rows)
    tn = max(8, (tn // 8) * 8)                     # (8,128) sublane constraint
    return n if n <= tn else tn                    # full-extent block is legal


def wasserstein_dro_loss(outputs, targets, features=None):
    """JAX wrapper mirroring WassersteinDROLoss.forward (returns scalar mean loss)."""
    n, c = outputs.shape
    tgt2d = targets.astype(jnp.int32).reshape(n, 1)

    d = 0 if features is None else features.shape[1]
    row_bytes = 4 * (c + d + 1)                    # f32 working set per row
    tn = _pick_tile(n, row_bytes)
    grid = (pl.cdiv(n, tn),)

    # Explicit VMEM limit: double-buffered input tiles + headroom, clamped to
    # a range that is safe on every generation (v5e/v6e/v7x).
    vmem_need = 2 * 2 * tn * row_bytes + (1 << 20)
    vmem_limit = int(min(max(vmem_need, 16 * 1024 * 1024), 32 * 1024 * 1024))

    cparams = pltpu.CompilerParams(
        dimension_semantics=("arbitrary",),        # batch axis is a reduction
        vmem_limit_bytes=vmem_limit,
    )
    out_shape = jax.ShapeDtypeStruct((1, 1), jnp.float32)
    out_spec = pl.BlockSpec(memory_space=pltpu.MemorySpace.SMEM)
    scratch = [pltpu.SMEM((1, 1), jnp.float32)]    # running loss sum

    if features is not None:
        out = pl.pallas_call(
            functools.partial(_wdro_kernel, n_total=n),
            out_shape=out_shape,
            grid=grid,
            in_specs=[
                pl.BlockSpec((tn, c), lambda i: (i, 0)),
                pl.BlockSpec((tn, 1), lambda i: (i, 0)),
                pl.BlockSpec((tn, d), lambda i: (i, 0)),
            ],
            out_specs=out_spec,
            scratch_shapes=scratch,
            compiler_params=cparams,
        )(outputs, tgt2d, features)
    else:
        out = pl.pallas_call(
            functools.partial(_ce_only_kernel, n_total=n),
            out_shape=out_shape,
            grid=grid,
            in_specs=[
                pl.BlockSpec((tn, c), lambda i: (i, 0)),
                pl.BlockSpec((tn, 1), lambda i: (i, 0)),
            ],
            out_specs=out_spec,
            scratch_shapes=scratch,
            compiler_params=cparams,
        )(outputs, tgt2d)

    return out[0, 0]


def _reference(outputs, targets, features=None):
    """Pure-JAX reference matching the PyTorch forward."""
    lse = jax.scipy.special.logsumexp(outputs, axis=1)
    ce = lse - jnp.take_along_axis(outputs, targets[:, None], axis=1)[:, 0]
    if features is None:
        return jnp.mean(ce)
    fnorm = jnp.linalg.norm(features, axis=1)
    penalty = jnp.maximum(fnorm - EPSILON, 0.0)
    probs = jax.nn.softmax(outputs, axis=1)
    confidence = jnp.max(probs, axis=1)
    margin = BASE_MARGIN * (1.0 + ADAPT_RATE * (1.0 - confidence))
    return jnp.mean(ce + margin * penalty)


if __name__ == "__main__":
    key = jax.random.PRNGKey(0)
    k1, k2, k3 = jax.random.split(key, 3)

    # Small shapes consistent with the module: batch=8, classes=32, feature=32.
    N, C, D = 8, 32, 32
    outputs = jax.random.normal(k1, (N, C), dtype=jnp.float32)
    targets = jax.random.randint(k2, (N,), 0, C, dtype=jnp.int32)
    features = jax.random.normal(k3, (N, D), dtype=jnp.float32)

    loss = wasserstein_dro_loss(outputs, targets, features)
    jax.block_until_ready(loss)
    ref = _reference(outputs, targets, features)
    assert jnp.allclose(loss, ref, rtol=1e-5, atol=1e-5), (loss, ref)

    # features=None branch
    loss_ce = wasserstein_dro_loss(outputs, targets, None)
    jax.block_until_ready(loss_ce)
    ref_ce = _reference(outputs, targets, None)
    assert jnp.allclose(loss_ce, ref_ce, rtol=1e-5, atol=1e-5), (loss_ce, ref_ce)

    # Multi-tile path with a ragged last tile (exercises accumulator + mask).
    N2 = 1000
    k4, k5, k6 = jax.random.split(jax.random.PRNGKey(1), 3)
    outputs2 = jax.random.normal(k4, (N2, C), dtype=jnp.float32)
    targets2 = jax.random.randint(k5, (N2,), 0, C, dtype=jnp.int32)
    features2 = jax.random.normal(k6, (N2, D), dtype=jnp.float32)

    loss2 = wasserstein_dro_loss(outputs2, targets2, features2)
    jax.block_until_ready(loss2)
    ref2 = _reference(outputs2, targets2, features2)
    assert jnp.allclose(loss2, ref2, rtol=1e-5, atol=1e-5), (loss2, ref2)

    print("KERNEL_OK")
</pallas_src>

<mosaic_0001>
module attributes {stable_mosaic.version = 11 : i64} {
  func.func @_wdro_kernel(%arg0: i32, %arg1: memref<8x32xf32, #tpu.memory_space<vmem>>, %arg2: memref<8x1xi32, #tpu.memory_space<vmem>>, %arg3: memref<8x32xf32, #tpu.memory_space<vmem>>, %arg4: memref<1x1xf32, #tpu.memory_space<smem>>, %arg5: memref<1x1xf32, #tpu.memory_space<smem>>) attributes {dimension_semantics = [#tpu.dimension_semantics<arbitrary>], iteration_bounds = array<i64: 1>, scalar_prefetch = 0 : i64, scratch_operands = 1 : i64, tpu.core_type = #tpu.core_type<tc>, window_params = [{transform_indices = @transform_0, window_bounds = array<i64: 8, 32>}, {transform_indices = @transform_1, window_bounds = array<i64: 8, 1>}, {transform_indices = @transform_2, window_bounds = array<i64: 8, 32>}, {transform_indices = @transform_3, window_bounds = array<i64: 1, 1>}]} {
    %c0_i32 = arith.constant 0 : i32
    %0 = arith.cmpi eq, %arg0, %c0_i32 : i32
    %1 = arith.extui %0 : i1 to i32
    %c0_i32_0 = arith.constant 0 : i32
    %2 = arith.cmpi ne, %1, %c0_i32_0 : i32
    scf.if %2 {
      %cst_25 = arith.constant 0.000000e+00 : f32
      %c0_26 = arith.constant 0 : index
      %c0_27 = arith.constant 0 : index
      %60 = memref.load %arg5[%c0_26, %c0_27] : memref<1x1xf32, #tpu.memory_space<smem>>
      memref.store %cst_25, %arg5[%c0_26, %c0_27] : memref<1x1xf32, #tpu.memory_space<smem>>
    } else {
    }
    %c0 = arith.constant 0 : index
    %c0_1 = arith.constant 0 : index
    %3 = vector.load %arg1[%c0, %c0_1] : memref<8x32xf32, #tpu.memory_space<vmem>>, vector<8x32xf32>
    %c0_2 = arith.constant 0 : index
    %c0_3 = arith.constant 0 : index
    %4 = vector.load %arg2[%c0_2, %c0_3] : memref<8x1xi32, #tpu.memory_space<vmem>>, vector<8x1xi32>
    %c0_4 = arith.constant 0 : index
    %c0_5 = arith.constant 0 : index
    %5 = vector.load %arg3[%c0_4, %c0_5] : memref<8x32xf32, #tpu.memory_space<vmem>>, vector<8x32xf32>
    %6 = tpu.iota {dimensions = array<i32: 1>} : vector<8x32xi32>
    %7 = vector.broadcast %4 : vector<8x1xi32> to vector<8x32xi32>
    %8 = arith.cmpi eq, %6, %7 : vector<8x32xi32>
    %cst = arith.constant 0.000000e+00 : f32
    %9 = vector.broadcast %cst : f32 to vector<8x32xf32>
    %10 = arith.select %8, %3, %9 : vector<8x32xi1>, vector<8x32xf32>
    %cst_6 = arith.constant dense<0.000000e+00> : vector<8xf32>
    %11 = vector.multi_reduction <add>, %10, %cst_6 [1] : vector<8x32xf32> to vector<8xf32>
    %12 = vector.shape_cast %11 : vector<8xf32> to vector<8x1xf32>
    %cst_7 = arith.constant dense<0xFF800000> : vector<8xf32>
    %13 = vector.multi_reduction <maximumf>, %3, %cst_7 [1] : vector<8x32xf32> to vector<8xf32>
    %14 = vector.shape_cast %13 : vector<8xf32> to vector<8x1xf32>
    %15 = vector.broadcast %14 : vector<8x1xf32> to vector<8x32xf32>
    %16 = arith.subf %3, %15 : vector<8x32xf32>
    %17 = math.exp %16 : vector<8x32xf32>
    %cst_8 = arith.constant dense<0.000000e+00> : vector<8xf32>
    %18 = vector.multi_reduction <add>, %17, %cst_8 [1] : vector<8x32xf32> to vector<8xf32>
    %19 = vector.shape_cast %18 : vector<8xf32> to vector<8x1xf32>
    %20 = math.log %19 : vector<8x1xf32>
    %21 = arith.addf %14, %20 : vector<8x1xf32>
    %22 = arith.subf %21, %12 : vector<8x1xf32>
    %23 = arith.mulf %5, %5 : vector<8x32xf32>
    %cst_9 = arith.constant dense<0.000000e+00> : vector<8xf32>
    %24 = vector.multi_reduction <add>, %23, %cst_9 [1] : vector<8x32xf32> to vector<8xf32>
    %25 = vector.shape_cast %24 : vector<8xf32> to vector<8x1xf32>
    %26 = math.sqrt %25 : vector<8x1xf32>
    %cst_10 = arith.constant 5.000000e-01 : f32
    %27 = vector.broadcast %cst_10 : f32 to vector<8x1xf32>
    %28 = arith.subf %26, %27 : vector<8x1xf32>
    %cst_11 = arith.constant 0.000000e+00 : f32
    %29 = vector.broadcast %cst_11 : f32 to vector<8x1xf32>
    %30 = arith.maximumf %28, %29 : vector<8x1xf32>
    %31 = tpu.reciprocal %19 : vector<8x1xf32> -> vector<8x1xf32>
    %cst_12 = arith.constant 1.000000e+00 : f32
    %32 = vector.broadcast %cst_12 : f32 to vector<8x1xf32>
    %33 = arith.subf %32, %31 : vector<8x1xf32>
    %cst_13 = arith.constant 3.000000e-01 : f32
    %34 = vector.broadcast %cst_13 : f32 to vector<8x1xf32>
    %35 = arith.mulf %34, %33 : vector<8x1xf32>
    %cst_14 = arith.constant 1.000000e+00 : f32
    %36 = vector.broadcast %cst_14 : f32 to vector<8x1xf32>
    %37 = arith.addf %36, %35 : vector<8x1xf32>
    %cst_15 = arith.constant 1.000000e+00 : f32
    %38 = vector.broadcast %cst_15 : f32 to vector<8x1xf32>
    %39 = arith.mulf %38, %37 : vector<8x1xf32>
    %40 = arith.mulf %39, %30 : vector<8x1xf32>
    %41 = arith.addf %22, %40 : vector<8x1xf32>
    %42 = tpu.iota {dimensions = array<i32: 0>} : vector<8x1xi32>
    %c8_i32 = arith.constant 8 : i32
    %43 = arith.muli %arg0, %c8_i32 : i32
    %44 = vector.broadcast %43 : i32 to vector<8x1xi32>
    %45 = arith.addi %42, %44 : vector<8x1xi32>
    %c8_i32_16 = arith.constant 8 : i32
    %46 = vector.broadcast %c8_i32_16 : i32 to vector<8x1xi32>
    %47 = arith.cmpi slt, %45, %46 : vector<8x1xi32>
    %cst_17 = arith.constant 0.000000e+00 : f32
    %48 = vector.broadcast %cst_17 : f32 to vector<8x1xf32>
    %49 = arith.select %47, %41, %48 : vector<8x1xi1>, vector<8x1xf32>
    %c0_18 = arith.constant 0 : index
    %c0_19 = arith.constant 0 : index
    %50 = memref.load %arg5[%c0_18, %c0_19] : memref<1x1xf32, #tpu.memory_space<smem>>
    %51 = vector.shape_cast %49 : vector<8x1xf32> to vector<1x8x1xf32>
    %cst_20 = arith.constant dense<0.000000e+00> : vector<1xf32>
    %52 = vector.multi_reduction <add>, %51, %cst_20 [1, 2] : vector<1x8x1xf32> to vector<1xf32>
    %53 = vector.shape_cast %52 : vector<1xf32> to vector<1x1x1xf32>
    %54 = vector.extract %53[0, 0, 0] : f32 from vector<1x1x1xf32>
    %55 = arith.addf %50, %54 : f32
    %c0_21 = arith.constant 0 : index
    %c0_22 = arith.constant 0 : index
    %56 = memref.load %arg5[%c0_21, %c0_22] : memref<1x1xf32, #tpu.memory_space<smem>>
    memref.store %55, %arg5[%c0_21, %c0_22] : memref<1x1xf32, #tpu.memory_space<smem>>
    %c0_i32_23 = arith.constant 0 : i32
    %57 = arith.cmpi eq, %arg0, %c0_i32_23 : i32
    %58 = arith.extui %57 : i1 to i32
    %c0_i32_24 = arith.constant 0 : i32
    %59 = arith.cmpi ne, %58, %c0_i32_24 : i32
    scf.if %59 {
      %c0_25 = arith.constant 0 : index
      %c0_26 = arith.constant 0 : index
      %60 = memref.load %arg5[%c0_25, %c0_26] : memref<1x1xf32, #tpu.memory_space<smem>>
      %cst_27 = arith.constant 1.250000e-01 : f32
      %61 = arith.mulf %60, %cst_27 : f32
      %c0_28 = arith.constant 0 : index
      %c0_29 = arith.constant 0 : index
      %62 = memref.load %arg4[%c0_28, %c0_29] : memref<1x1xf32, #tpu.memory_space<smem>>
      memref.store %61, %arg4[%c0_28, %c0_29] : memref<1x1xf32, #tpu.memory_space<smem>>
    } else {
    }
    return
  }
  func.func @transform_0(%arg0: i32) -> (i32, i32) {
    %c0_i32 = arith.constant 0 : i32
    %c0_i32_0 = arith.constant 0 : i32
    return %arg0, %c0_i32 : i32, i32
  }
  func.func @transform_1(%arg0: i32) -> (i32, i32) {
    %c0_i32 = arith.constant 0 : i32
    %c0_i32_0 = arith.constant 0 : i32
    return %arg0, %c0_i32 : i32, i32
  }
  func.func @transform_2(%arg0: i32) -> (i32, i32) {
    %c0_i32 = arith.constant 0 : i32
    %c0_i32_0 = arith.constant 0 : i32
    return %arg0, %c0_i32 : i32, i32
  }
  func.func @transform_3(%arg0: i32) -> (i32, i32) {
    %c0_i32 = arith.constant 0 : i32
    %c0_i32_0 = arith.constant 0 : i32
    %c0_i32_1 = arith.constant 0 : i32
    return %c0_i32, %c0_i32_0 : i32, i32
  }
}

</mosaic_0001>

<llo_original>
// kernel: tpu_custom_call.1
$region0: #{tpu_custom_call.1}
  #allocation0 [shape = 'u32[]', space=smem, size = 0x4, offset = 0x4, fixed_abs, tag = 'smem constant byte address 0x4 - core index']
  #allocation1 [shape = 'u32[144,128]{1,0:T(1,128)}', space=vmem, size = 0x12000, scoped, tag = 'internal scratch']
  #allocation2 [shape = 'f32[1,1]{1,0:T(1,128)}', space=smem, size = 0x200, scoped, tag = 'scratch operand']
  %s0 = inlined_call_operand.vmem [shape: f32[8,32], index: 0, kind: input, shape index: {}]
  %s1 = inlined_call_operand.vmem [shape: s32[8,1], index: 1, kind: input, shape index: {}]
  %s2 = inlined_call_operand.hbm [shape: f32[8,32], index: 2, kind: input, shape index: {}]
  %s3 = inlined_call_operand.hbm [shape: f32[1,1], index: 3, kind: output, shape index: {}]
  %s4 = sld [smem:[#allocation0]]
  $region34: #{tpu_custom_call.1} parent=0
    _
  %s6 = ssub.s32 1, %s4
  %s7 = scalar_select 0, %s6, %s4
  $region1: #{tpu_custom_call.1} parent=0
    #allocation3 [shape = 'u8[4096]{0}', space=vmem, size = 0x1000, scoped, tag = 'input window, operand 2, single buffered']
    #allocation4 [shape = 's32[1]{0}', space=sflag, size = 0x4, scoped, tag = 'scoped memory for tpu_custom_call.1']
    #allocation5 [shape = 's32[1]{0}', space=sflag, size = 0x4, scoped, tag = 'scoped memory for tpu_custom_call.1']
    #allocation6 [shape = 'u8[512]{0}', space=smem, size = 0x200, scoped, tag = 'output window, operand 0, single buffered']
    %8 = vsyncpa [#allocation4], 0
    %9 = vsyncpa [#allocation5], 0
    // Predicated region
    $region2: #{tpu_custom_call.1} parent=1 // pred_check
      _
    $region3: #{tpu_custom_call.1} parent=1 // pred_check_branch
      %11 = sbr.rel (0) target = $region5
    $region4: #{tpu_custom_call.1} parent=1 // pred_region
      _
    $region5: #{tpu_custom_call.1} parent=1 // pred_fallthru
      _
    // Predicated region
    $region6: #{tpu_custom_call.1} parent=1 // pred_check
      _
    $region7: #{tpu_custom_call.1} parent=1 // pred_check_branch
      %13 = sbr.rel (0) target = $region9
    $region8: #{tpu_custom_call.1} parent=1 // pred_region
      _
    $region9: #{tpu_custom_call.1} parent=1 // pred_fallthru
      _
    // Predicated region
    $region10: #{tpu_custom_call.1} parent=1 // pred_check
      _
    $region11: #{tpu_custom_call.1} parent=1 // pred_check_branch
      %15 = sbr.rel (0) target = $region13
    $region12: #{tpu_custom_call.1} parent=1 // pred_region
      %s17 = ssub.s32 128, 128
      %18 = vsyncadd [#allocation4], %s17
      %s20 = sshll.u32 [#allocation3], 4
      %s21 = int_to_ptr.vmem [resolvable:$true] %s20
      %23 = dma.hbm_to_vmem [thread:$0]  %s2, 128, %s21, [#allocation4]
    $region13: #{tpu_custom_call.1} parent=1 // pred_fallthru
      _
    // Predicated region
    $region14: #{tpu_custom_call.1} parent=1 // pred_check
      _
    $region15: #{tpu_custom_call.1} parent=1 // pred_check_branch
      %25 = sbr.rel (0) target = $region17
    $region16: #{tpu_custom_call.1} parent=1 // pred_region
      %26 = dma.done [#allocation4], 128
    $region17: #{tpu_custom_call.1} parent=1 // pred_fallthru
      _
    %p27 = scmp.eq.s32.totalorder 0, 0
    // Predicated region
    $region18: #{tpu_custom_call.1} parent=1 // pred_check
      %p28 = pneg %p27
    $region19: #{tpu_custom_call.1} parent=1 // pred_check_branch
      %30 = sbr.rel (%p28) target = $region21
    $region20: #{tpu_custom_call.1} parent=1 // pred_region
      %s31 = scalar_lea.smem [#allocation2], 0
      %32 = sst [smem:[%s31]] 0.0
    $region21: #{tpu_custom_call.1} parent=1 // pred_fallthru
      _
    %v33 = vld [vmem:[%s0] sm:$0xff]
    %v34 = vld [vmem:[%s1] sm:$0xff]
    %v35 = vld [vmem:[#allocation3] sm:$0xff]
    %v36 = vlaneseq
    %v37 = vand.u32 %v36, 127
    %38 = vset.pattern.permute.xlu0 0
    %39 = vperm.xlu0 %38, %v34
    %v40 = vpop.permute.xlu0 %39
    %vm41 = vcmp.eq.s32.totalorder %v37, %v40
    %v42 = vsel %vm41, %v33, 0.0
    %vm43 = vcmask 261120
    %v44 = vsel %vm43, %v42, 0.0
    %45 = vadd.xlane.f32.xlu0 %v44
    %v46 = vpop.xlane.xlu0 %45
    %v47 = vsel %vm43, %v33, -inf
    %48 = vmax.xlane.f32.xlu0 %v47
    %v49 = vpop.xlane.xlu0 %48
    %v50 = vsub.f32 %v33, %v49
    %v51 = vmul.f32 %v50, 1.442695
    %v52 = vpow.pop %v51
    %v53 = vsel %vm43, %v52, 0.0
    %54 = vadd.xlane.f32.xlu0 %v53
    %v55 = vpop.xlane.xlu0 %54
    %v56 = vlog2.pop %v55
    %v57 = vmul.f32 %v56, 0.6931472
    %v58 = vadd.f32 %v49, %v57
    %v59 = vsub.f32 %v58, %v46
    %v60 = vmul.f32 %v35, %v35
    %v61 = vsel %vm43, %v60, 0.0
    %62 = vadd.xlane.f32.xlu0 %v61
    %v63 = vpop.xlane.xlu0 %62
    %v64 = vrsqrt.pop %v63
    %v65 = vmul.f32 %v63, %v64
    %vm66 = vcmp.eq.f32.partialorder %v63, inf
    %v67 = vsel %vm66, %v63, %v65
    %vm68 = vcmp.eq.f32.partialorder %v63, 0.0
    %v69 = vand.u32 %v63, 2147483648
    %v70 = vsel %vm68, %v69, %v67
    %v71 = vsub.f32 %v70, 0.5
    %v72 = vmax.f32 %v71, 0.0
    %v73 = vrcp.pop %v55
    %v74 = vsub.f32 1.0, %v73
    %v75 = vmul.f32 %v74, 0.3
    %v76 = vadd.f32 %v75, 1.0
    %v77 = vmul.f32 %v76, %v72
    %v78 = vadd.f32 %v59, %v77
    %v79 = vlaneseq
    %v80 = vshrl.u32 %v79, 7
    %s81 = smul.u32 0, 8
    %v82 = vstv %s81
    %v83 = vadd.s32 %v80, %v82
    %vm84 = vcmp.lt.s32.totalorder %v83, 8
    %v85 = vsel %vm84, %v78, 0.0
    %s86 = sld [smem:[#allocation2]]
    %vm87 = vcmask 7168
    %v88 = vsel %vm87, %v85, 0.0
    %89 = vadd.xlane.f32.xlu0 %v88
    %v90 = vpop.xlane.xlu0 %89
    %v91 = vrot.slane %v90, 4
    %v92 = vadd.f32 %v90, %v91
    %v93 = vrot.slane %v92, 2
    %v94 = vadd.f32 %v92, %v93
    %v95 = vrot.slane %v94, 1
    %v96 = vadd.f32 %v94, %v95
    %s97 = vtos %v96
    %s98 = sadd.f32 %s86, %s97
    %s99 = scalar_lea.smem [#allocation2], 0
    %100 = sst [smem:[%s99]] %s98
    // Predicated region
    $region22: #{tpu_custom_call.1} parent=1 // pred_check
      %p101 = pneg %p27
    $region23: #{tpu_custom_call.1} parent=1 // pred_check_branch
      %103 = sbr.rel (%p101) target = $region25
    $region24: #{tpu_custom_call.1} parent=1 // pred_region
      %s104 = sld [smem:[#allocation2]]
      %s105 = smul.f32 %s104, 0.125
      %s106 = scalar_lea.smem [#allocation6], 0
      %107 = sst [smem:[%s106]] %s105
    $region25: #{tpu_custom_call.1} parent=1 // pred_fallthru
      _
    // Predicated region
    $region26: #{tpu_custom_call.1} parent=1 // pred_check
      _
    $region27: #{tpu_custom_call.1} parent=1 // pred_check_branch
      %109 = sbr.rel (0) target = $region29
    $region28: #{tpu_custom_call.1} parent=1 // pred_region
      %s111 = ssub.s32 16, 16
      %112 = vsyncadd [#allocation5], %s111
      %115 = dma.smem_to_hbm [#allocation6], 16, %s3, [#allocation5]
    $region29: #{tpu_custom_call.1} parent=1 // pred_fallthru
      _
    // Predicated region
    $region30: #{tpu_custom_call.1} parent=1 // pred_check
      _
    $region31: #{tpu_custom_call.1} parent=1 // pred_check_branch
      %117 = sbr.rel (0) target = $region33
    $region32: #{tpu_custom_call.1} parent=1 // pred_region
      %118 = dma.done [#allocation5], 16
    $region33: #{tpu_custom_call.1} parent=1 // pred_fallthru
      _
    %119 = sfence
    %120 = vsyncpa [#allocation4], 1
    %121 = vsyncpa [#allocation5], 1

</llo_original>
